<compile_context>
chip_gen: v5e
topology: v5e:2x2
jax: 0.10.0
libtpu: 0.0.40
codegen_flags: <defaults>
</compile_context>

<pallas_src>
import jax
import jax.numpy as jnp
from jax.experimental import pallas as pl
from jax.experimental.pallas import tpu as pltpu


def _conv3x3_prelu_kernel(p_ref, w_ref, b_ref, alpha_ref, o_ref):
    """One lane-tile of the batch-folded im2col conv + bias + PReLU.

    p_ref:     (K_pad, Lt)   im2col patches, lanes = flattened (n, h, w)
    w_ref:     (Cout, K_pad) conv weight, K ordered (ki, kj, ci)
    b_ref:     (Cout, 1)     conv bias (broadcast along lanes), f32
    alpha_ref: (1, 1) SMEM   PReLU shared slope, f32
    o_ref:     (Cout, Lt)    conv(+PReLU) output tile, lane-dense
    """
    # Single MXU matmul; result is lane-dense (Cout, Lt) in f32.
    y = jnp.dot(w_ref[...], p_ref[...], preferred_element_type=jnp.float32)
    y = y + b_ref[...]                      # (Cout, 1) broadcasts along lanes
    alpha = alpha_ref[0, 0]
    y = jnp.where(y > 0, y, alpha * y)      # PReLU (single shared slope)
    o_ref[...] = y.astype(o_ref.dtype)


def _num_lane_tiles(total_lanes):
    """Split the folded lane dim into a small 'parallel' grid.

    >=2 tiles (one per TensorCore on v7x) when the lane dim is wide enough to
    keep every tile a multiple of 128 lanes and >=256 wide; otherwise one
    full-width step (single-TC v5e/v6e pay no extra per-step overhead).
    """
    if total_lanes % 256 == 0 and total_lanes >= 512:
        n = 2
        # Keep each tile's blocks comfortably inside a v7x-sized VMEM budget.
        while total_lanes // n > 8192 and (total_lanes // (2 * n)) % 128 == 0:
            n *= 2
        return n
    return 1


def upsample_block(x_nchw, weight_oihw, bias, alpha, *, up_scale,
                   operand_dtype=jnp.float32):
    """Forward pass of UpsampleBLock.

    x_nchw:      (N, Cin, H, W)     float32, NCHW like PyTorch
    weight_oihw: (Cout, Cin, 3, 3)  conv weight, PyTorch OIHW layout
    bias:        (Cout,)            conv bias
    alpha:       (1, 1)             PReLU shared slope (num_parameters=1)
    returns:     (N, Cin, H*r, W*r) NCHW, matching PyTorch output
    """
    N, Cin, H, W = x_nchw.shape
    r = up_scale
    Cout = Cin * r * r
    HW = H * W
    L = N * HW
    K = 9 * Cin

    # Fusing PReLU before the pixel shuffle is only valid for a single shared
    # slope (nn.PReLU() default).  Per-channel slopes would need indexing by
    # the pre-shuffle channel (alpha[c // r^2]) inside the kernel instead.
    assert alpha.size == 1, "kernel fuses PReLU pre-shuffle; requires a shared slope"

    # Pad the contraction dim to a sublane multiple (8 for f32, 16 for bf16).
    sub = 16 if operand_dtype == jnp.bfloat16 else 8
    K_pad = -(-K // sub) * sub

    # Batch-folded im2col operand:
    #   patches[(ki*3+kj)*Cin + ci, n*HW + h*W + w] = x_pad[n, ci, h+ki, w+kj]
    # Under jit, XLA fuses pad + 9 slices + stack + transpose into a single
    # producer pass (no standalone transpose/pad round trips through HBM).
    xp = jnp.pad(x_nchw, ((0, 0), (0, 0), (1, 1), (1, 1)))
    taps = [xp[:, :, ki:ki + H, kj:kj + W] for ki in range(3) for kj in range(3)]
    patches = jnp.stack(taps, axis=0)                        # (9, N, Cin, H, W)
    patches = jnp.transpose(patches, (0, 2, 1, 3, 4)).reshape(K, L)
    patches = jnp.pad(patches, ((0, K_pad - K), (0, 0))).astype(operand_dtype)

    # Weight as (Cout, K_pad) with the same (ki, kj, ci) K ordering.
    w_mat = jnp.transpose(weight_oihw, (0, 2, 3, 1)).reshape(Cout, K)
    w_mat = jnp.pad(w_mat, ((0, 0), (0, K_pad - K))).astype(operand_dtype)
    b_col = bias.reshape(Cout, 1).astype(jnp.float32)
    alpha_smem = alpha.reshape(1, 1).astype(jnp.float32)

    n_tiles = _num_lane_tiles(L)
    Lt = L // n_tiles

    conv_flat = pl.pallas_call(
        _conv3x3_prelu_kernel,
        out_shape=jax.ShapeDtypeStruct((Cout, L), x_nchw.dtype),
        grid_spec=pltpu.PrefetchScalarGridSpec(
            num_scalar_prefetch=0,
            grid=(n_tiles,),
            in_specs=[
                pl.BlockSpec((K_pad, Lt), lambda t: (0, t)),
                pl.BlockSpec((Cout, K_pad), lambda t: (0, 0)),
                pl.BlockSpec((Cout, 1), lambda t: (0, 0)),
                pl.BlockSpec(memory_space=pltpu.MemorySpace.SMEM),
            ],
            out_specs=pl.BlockSpec((Cout, Lt), lambda t: (0, t)),
        ),
        compiler_params=pltpu.CompilerParams(
            dimension_semantics=("parallel",),
        ),
    )(patches, w_mat, b_col, alpha_smem)

    # conv_flat[co, n*HW + h*W + w] is the NCHW conv(+PReLU) output with batch
    # and spatial dims folded onto lanes.  PixelShuffle is a pure index
    # rearrangement done as ONE external transpose on the small lane-dense
    # output (fused by XLA into the consumer under jit):
    #   (Cout, N*HW) -> (N, Cin, H*r, W*r)
    y = conv_flat.reshape(Cin, r, r, N, H, W)
    y = jnp.transpose(y, (3, 0, 4, 1, 5, 2))
    return y.reshape(N, Cin, H * r, W * r)


def _reference(x_nchw, weight_oihw, bias, alpha, up_scale):
    """Pure-JAX reference (lax conv + pixel shuffle + PReLU) for verification."""
    N, Cin, H, W = x_nchw.shape
    r = up_scale
    conv = jax.lax.conv_general_dilated(
        x_nchw, weight_oihw, window_strides=(1, 1), padding=((1, 1), (1, 1)),
        dimension_numbers=("NCHW", "OIHW", "NCHW"),
    ) + bias.reshape(1, -1, 1, 1)
    y = conv.reshape(N, Cin, r, r, H, W)
    y = jnp.transpose(y, (0, 1, 4, 2, 5, 3)).reshape(N, Cin, H * r, W * r)
    a = alpha.reshape(())
    return jnp.where(y > 0, y, a * y)


if __name__ == "__main__":
    # Module config: in_channels=4, up_scale=2  (Conv2d: 4 -> 16, k=3, pad=1)
    in_channels, up_scale = 4, 2
    N, H, W = 2, 16, 16
    Cout = in_channels * up_scale ** 2

    key = jax.random.PRNGKey(0)
    kx, kw, kb = jax.random.split(key, 3)
    x = jax.random.normal(kx, (N, in_channels, H, W), dtype=jnp.float32)
    # Deterministic synthetic parameters (shapes from the module __init__).
    weight = 0.1 * jax.random.normal(kw, (Cout, in_channels, 3, 3), dtype=jnp.float32)
    bias = 0.05 * jax.random.normal(kb, (Cout,), dtype=jnp.float32)
    alpha = jnp.full((1, 1), 0.25, dtype=jnp.float32)  # nn.PReLU() default init

    fwd = jax.jit(upsample_block, static_argnames=("up_scale", "operand_dtype"))

    # f32 path (matches PyTorch numerics).
    out = jax.block_until_ready(fwd(x, weight, bias, alpha, up_scale=up_scale))
    ref = _reference(x, weight, bias, alpha, up_scale)
    assert out.shape == (N, in_channels, H * up_scale, W * up_scale), out.shape
    assert jnp.allclose(out, ref, atol=1e-4, rtol=1e-4), \
        float(jnp.max(jnp.abs(out - ref)))

    # bf16 MXU operands (the compute/bandwidth lever at production shapes);
    # f32 accumulation + f32 epilogue, so only a looser tolerance is required.
    out_bf16 = jax.block_until_ready(
        fwd(x, weight, bias, alpha, up_scale=up_scale, operand_dtype=jnp.bfloat16))
    assert jnp.allclose(out_bf16, ref, atol=5e-2, rtol=5e-2), \
        float(jnp.max(jnp.abs(out_bf16 - ref)))

    print("KERNEL_OK")
</pallas_src>

<mosaic_0001>
module attributes {stable_mosaic.version = 11 : i64} {
  func.func @_conv3x3_prelu_kernel(%arg0: i32, %arg1: memref<40x256xf32, #tpu.memory_space<vmem>>, %arg2: memref<16x40xf32, #tpu.memory_space<vmem>>, %arg3: memref<16x1xf32, #tpu.memory_space<vmem>>, %arg4: memref<1x1xf32, #tpu.memory_space<smem>>, %arg5: memref<16x256xf32, #tpu.memory_space<vmem>>) attributes {dimension_semantics = [#tpu.dimension_semantics<parallel>], iteration_bounds = array<i64: 2>, scalar_prefetch = 0 : i64, scratch_operands = 0 : i64, tpu.core_type = #tpu.core_type<tc>, window_params = [{transform_indices = @transform_0, window_bounds = array<i64: 40, 256>}, {pipeline_mode = #tpu.pipeline_mode<synchronous>, transform_indices = @transform_1, window_bounds = array<i64: 16, 40>}, {pipeline_mode = #tpu.pipeline_mode<synchronous>, transform_indices = @transform_2, window_bounds = array<i64: 16, 1>}, {transform_indices = @transform_3, window_bounds = array<i64: 1, 1>}, {transform_indices = @transform_4, window_bounds = array<i64: 16, 256>}]} {
    %c0 = arith.constant 0 : index
    %c0_0 = arith.constant 0 : index
    %0 = vector.load %arg2[%c0, %c0_0] : memref<16x40xf32, #tpu.memory_space<vmem>>, vector<16x40xf32>
    %c0_1 = arith.constant 0 : index
    %c0_2 = arith.constant 0 : index
    %1 = vector.load %arg1[%c0_1, %c0_2] : memref<40x256xf32, #tpu.memory_space<vmem>>, vector<40x256xf32>
    %cst = arith.constant dense<0.000000e+00> : vector<16x256xf32>
    %2 = tpu.matmul %0, %1, %cst {dimension_numbers = #tpu.dot_dimension_numbers<[1], [0], [0], [1], [0, 0, 1, 1], [], []>} : vector<16x40xf32>, vector<40x256xf32>, vector<16x256xf32> -> vector<16x256xf32>
    %c0_3 = arith.constant 0 : index
    %c0_4 = arith.constant 0 : index
    %3 = vector.load %arg3[%c0_3, %c0_4] : memref<16x1xf32, #tpu.memory_space<vmem>>, vector<16x1xf32>
    %4 = vector.broadcast %3 : vector<16x1xf32> to vector<16x256xf32>
    %5 = arith.addf %2, %4 : vector<16x256xf32>
    %c0_5 = arith.constant 0 : index
    %c0_6 = arith.constant 0 : index
    %6 = memref.load %arg4[%c0_5, %c0_6] : memref<1x1xf32, #tpu.memory_space<smem>>
    %cst_7 = arith.constant 0.000000e+00 : f32
    %7 = vector.broadcast %cst_7 : f32 to vector<16x256xf32>
    %8 = arith.cmpf ogt, %5, %7 : vector<16x256xf32>
    %9 = vector.broadcast %6 : f32 to vector<16x256xf32>
    %10 = arith.mulf %9, %5 : vector<16x256xf32>
    %11 = arith.select %8, %5, %10 : vector<16x256xi1>, vector<16x256xf32>
    %c0_8 = arith.constant 0 : index
    %c0_9 = arith.constant 0 : index
    %12 = vector.load %arg5[%c0_8, %c0_9] : memref<16x256xf32, #tpu.memory_space<vmem>>, vector<16x256xf32>
    tpu.vector_store %arg5[%c0_8, %c0_9], %11 {strides = array<i32>} : memref<16x256xf32, #tpu.memory_space<vmem>>, vector<16x256xf32>,
    return
  }
  func.func @transform_0(%arg0: i32) -> (i32, i32) {
    %c0_i32 = arith.constant 0 : i32
    %c0_i32_0 = arith.constant 0 : i32
    return %c0_i32, %arg0 : i32, i32
  }
  func.func @transform_1(%arg0: i32) -> (i32, i32) {
    %c0_i32 = arith.constant 0 : i32
    %c0_i32_0 = arith.constant 0 : i32
    %c0_i32_1 = arith.constant 0 : i32
    return %c0_i32, %c0_i32_0 : i32, i32
  }
  func.func @transform_2(%arg0: i32) -> (i32, i32) {
    %c0_i32 = arith.constant 0 : i32
    %c0_i32_0 = arith.constant 0 : i32
    %c0_i32_1 = arith.constant 0 : i32
    return %c0_i32, %c0_i32_0 : i32, i32
  }
  func.func @transform_3(%arg0: i32) -> (i32, i32) {
    %c0_i32 = arith.constant 0 : i32
    %c0_i32_0 = arith.constant 0 : i32
    %c0_i32_1 = arith.constant 0 : i32
    return %c0_i32, %c0_i32_0 : i32, i32
  }
  func.func @transform_4(%arg0: i32) -> (i32, i32) {
    %c0_i32 = arith.constant 0 : i32
    %c0_i32_0 = arith.constant 0 : i32
    return %c0_i32, %arg0 : i32, i32
  }
}

</mosaic_0001>

<llo_original>
// kernel: upsample_block.1
$region0: #{upsample_block.1}
  #allocation0 [shape = 'u32[]', space=smem, size = 0x4, offset = 0x4, fixed_abs, tag = 'smem constant byte address 0x4 - core index']
  #allocation1 [shape = 'u32[72,128]{1,0:T(1,128)}', space=vmem, size = 0x9000, scoped, tag = 'internal scratch']
  #allocation2 [shape = 'f32[1,1]{1,0:T(1,128)S(6)}', space=smem, size = 0x200, scoped, tag = 'scoped memory for upsample_block.1']
  %s0 = inlined_call_operand.vmem [shape: f32[40,512], index: 0, kind: input, shape index: {}]
  %s1 = inlined_call_operand.vmem [shape: f32[16,40], index: 1, kind: input, shape index: {}]
  %s2 = inlined_call_operand.vmem [shape: f32[16,1], index: 2, kind: input, shape index: {}]
  %s3 = inlined_call_operand.<no memory space> [shape: f32[1,1], index: 3, kind: input, shape index: {}]
  %s4 = inlined_call_operand.vmem [shape: f32[16,512], index: 4, kind: output, shape index: {}]
  %s5 = sld [smem:[#allocation0]]
  $region91: #{upsample_block.1} parent=0
    _
  %s7 = ssub.s32 1, %s5
  %s8 = scalar_select 0, %s7, %s5
  %9 = sst [smem:[#allocation2]] %s3
  $region1: #{upsample_block.1} parent=0
    #allocation3 [shape = 'u8[81920]{0}', space=vmem, size = 0x14000, scoped, tag = 'input window, operand 0']
    #allocation4 [shape = 'u8[32768]{0}', space=vmem, size = 0x8000, scoped, tag = 'output window, operand 0']
    loop: start=0, step=1, limit=4
    $region2: #{upsample_block.1} parent=1 // loop_pre_header
      _
    $region3: #{upsample_block.1} parent=1 // loop_header
      %s11 = sphi 0, %s15
      %p12 = scmp.ge.s32.totalorder %s11, 4
      %s21 = sphi 0, %s23
      %s24 = sphi 0, %s21
      %s25 = sphi 0, %s24
      %s41 = sphi 0, %s25
      %s45 = sphi 0, %s45
      %s47 = sphi 0, %s45
      %s48 = sphi 0, %s47
      %s62 = sphi 0, %s48
      %s66 = sphi 0, %s66
      %s68 = sphi 0, %s66
      %s69 = sphi 0, %s68
      %s83 = sphi 0, %s69
      %s87 = sphi 0, %s87
      %s89 = sphi 0, %s87
      %s90 = sphi 0, %s89
      %s104 = sphi 0, %s90
      %s110 = sphi 0, %s112
      %s113 = sphi 0, %s110
      %s114 = sphi 0, %s113
      %s130 = sphi 0, %s114
    $region4: #{upsample_block.1} parent=1 // loop_header_branch
      %14 = sbr.rel (%p12) target = $region8
    $region5: #{upsample_block.1} parent=1 // loop_body
      %s16 = ssub.s32 %s11, 1
      %s17 = ssub.s32 %s11, 2
      %s18 = sadd.s32 %s11, 1
      %s19 = ssub.s32 %s11, %s18
      %p20 = scmp.eq.s32.totalorder %s19, 0
      %s22 = sadd.s32 %s21, 1
      %s23 = scalar_select %p20, %s21, %s22
      %p26 = pneg %p20
      %p27 = scmp.eq.s32.totalorder %s11, 1
      %p28 = por %p26, %p27
      %p29 = scmp.ne.s32.totalorder %s21, %s24
      %p30 = scmp.eq.s32.totalorder %s11, 0
      %p31 = por %p29, %p30
      %p32 = scmp.ne.s32.totalorder %s21, %s24
      %p33 = scmp.eq.s32.totalorder %s16, 1
      %p34 = por %p32, %p33
      %p35 = scmp.ne.s32.totalorder %s24, %s25
      %p36 = scmp.eq.s32.totalorder %s16, 0
      %p37 = por %p35, %p36
      %p38 = scmp.ne.s32.totalorder %s24, %s25
      %p39 = scmp.eq.s32.totalorder %s17, 1
      %p40 = por %p38, %p39
      %p42 = scmp.ne.s32.totalorder %s25, %s41
      %p43 = scmp.eq.s32.totalorder %s17, 0
      %p44 = por %p42, %p43
      %s46 = sadd.s32 %s45, 1
      %p49 = scmp.eq.s32.totalorder %s11, 1
      %p50 = scmp.ne.s32.totalorder %s45, %s47
      %p51 = scmp.eq.s32.totalorder %s11, 0
      %p52 = por %p50, %p51
      %p53 = scmp.ne.s32.totalorder %s45, %s47
      %p54 = scmp.eq.s32.totalorder %s16, 1
      %p55 = por %p53, %p54
      %p56 = scmp.ne.s32.totalorder %s47, %s48
      %p57 = scmp.eq.s32.totalorder %s16, 0
      %p58 = por %p56, %p57
      %p59 = scmp.ne.s32.totalorder %s47, %s48
      %p60 = scmp.eq.s32.totalorder %s17, 1
      %p61 = por %p59, %p60
      %p63 = scmp.ne.s32.totalorder %s48, %s62
      %p64 = scmp.eq.s32.totalorder %s17, 0
      %p65 = por %p63, %p64
      %s67 = sadd.s32 %s66, 1
      %p70 = scmp.eq.s32.totalorder %s11, 1
      %p71 = scmp.ne.s32.totalorder %s66, %s68
      %p72 = scmp.eq.s32.totalorder %s11, 0
      %p73 = por %p71, %p72
      %p74 = scmp.ne.s32.totalorder %s66, %s68
      %p75 = scmp.eq.s32.totalorder %s16, 1
      %p76 = por %p74, %p75
      %p77 = scmp.ne.s32.totalorder %s68, %s69
      %p78 = scmp.eq.s32.totalorder %s16, 0
      %p79 = por %p77, %p78
      %p80 = scmp.ne.s32.totalorder %s68, %s69
      %p81 = scmp.eq.s32.totalorder %s17, 1
      %p82 = por %p80, %p81
      %p84 = scmp.ne.s32.totalorder %s69, %s83
      %p85 = scmp.eq.s32.totalorder %s17, 0
      %p86 = por %p84, %p85
      %s88 = sadd.s32 %s87, 1
      %p91 = scmp.eq.s32.totalorder %s11, 1
      %p92 = scmp.ne.s32.totalorder %s87, %s89
      %p93 = scmp.eq.s32.totalorder %s11, 0
      %p94 = por %p92, %p93
      %p95 = scmp.ne.s32.totalorder %s87, %s89
      %p96 = scmp.eq.s32.totalorder %s16, 1
      %p97 = por %p95, %p96
      %p98 = scmp.ne.s32.totalorder %s89, %s90
      %p99 = scmp.eq.s32.totalorder %s16, 0
      %p100 = por %p98, %p99
      %p101 = scmp.ne.s32.totalorder %s89, %s90
      %p102 = scmp.eq.s32.totalorder %s17, 1
      %p103 = por %p101, %p102
      %p105 = scmp.ne.s32.totalorder %s90, %s104
      %p106 = scmp.eq.s32.totalorder %s17, 0
      %p107 = por %p105, %p106
      %s108 = ssub.s32 %s11, %s18
      %p109 = scmp.eq.s32.totalorder %s108, 0
      %s111 = sadd.s32 %s110, 1
      %s112 = scalar_select %p109, %s110, %s111
      %p115 = pneg %p109
      %p116 = scmp.eq.s32.totalorder %s11, 1
      %p117 = por %p115, %p116
      %p118 = scmp.ne.s32.totalorder %s110, %s113
      %p119 = scmp.eq.s32.totalorder %s11, 0
      %p120 = por %p118, %p119
      %p121 = scmp.ne.s32.totalorder %s110, %s113
      %p122 = scmp.eq.s32.totalorder %s16, 1
      %p123 = por %p121, %p122
      %p124 = scmp.ne.s32.totalorder %s113, %s114
      %p125 = scmp.eq.s32.totalorder %s16, 0
      %p126 = por %p124, %p125
      %p127 = scmp.ne.s32.totalorder %s113, %s114
      %p128 = scmp.eq.s32.totalorder %s17, 1
      %p129 = por %p127, %p128
      %p131 = scmp.ne.s32.totalorder %s114, %s130
      %p132 = scmp.eq.s32.totalorder %s17, 0
      %p133 = por %p131, %p132
      %p134 = scmp.le.s32.totalorder 1, %s11
      %p135 = scmp.lt.s32.totalorder %s11, 3
      %p136 = pnand %p134, %p135
      %p137 = pneg %p136
      // Predicated region
      $region9: #{upsample_block.1} parent=5 // pred_check
        _
      $region10: #{upsample_block.1} parent=5 // pred_check_branch
        %139 = sbr.rel (%p136) target = $region12
      $region11: #{upsample_block.1} parent=5 // pred_region
        %s140 = ssub.s32 %s11, 1
        // Predicated region
        $region13: #{upsample_block.1} parent=11 // pred_check
          %p141 = pneg %p58
        $region14: #{upsample_block.1} parent=11 // pred_check_branch
          %143 = sbr.rel (%p141) target = $region16
        $region15: #{upsample_block.1} parent=11 // pred_region
          _
        $region16: #{upsample_block.1} parent=11 // pred_fallthru
          _
        // Predicated region
        $region17: #{upsample_block.1} parent=11 // pred_check
          %p144 = pneg %p79
        $region18: #{upsample_block.1} parent=11 // pred_check_branch
          %146 = sbr.rel (%p144) target = $region20
        $region19: #{upsample_block.1} parent=11 // pred_region
          _
        $region20: #{upsample_block.1} parent=11 // pred_fallthru
          _
        // Predicated region
        $region21: #{upsample_block.1} parent=11 // pred_check
          %p147 = pneg %p100
        $region22: #{upsample_block.1} parent=11 // pred_check_branch
          %149 = sbr.rel (%p147) target = $region24
        $region23: #{upsample_block.1} parent=11 // pred_region
          _
        $region24: #{upsample_block.1} parent=11 // pred_fallthru
          _
      $region12: #{upsample_block.1} parent=5 // pred_fallthru
        _
      %p150 = scmp.lt.s32.totalorder %s11, 2
      // Predicated region
      $region25: #{upsample_block.1} parent=5 // pred_check
        %p151 = pneg %p150
      $region26: #{upsample_block.1} parent=5 // pred_check_branch
        %153 = sbr.rel (%p151) target = $region28
      $region27: #{upsample_block.1} parent=5 // pred_region
        // Predicated region
        $region29: #{upsample_block.1} parent=27 // pred_check
          %p154 = pneg %p31
        $region30: #{upsample_block.1} parent=27 // pred_check_branch
          %156 = sbr.rel (%p154) target = $region32
        $region31: #{upsample_block.1} parent=27 // pred_region
          %s157 = sand.u32 %s21, 1
          %s158 = sand.u32 %s21, 1
          %s159 = smul.addr %s158, 80
          %s160 = scalar_lea.vmem [#allocation3], %s159
          %s161 = smul.u32 2, %s11
          %s162 = smul.addr %s161, 8
          %s163 = scalar_lea.vmem %s0, %s162
          // Predicated region
          $region33: #{upsample_block.1} parent=31 // pred_check
            _
          $region34: #{upsample_block.1} parent=31 // pred_check_branch
            %165 = sbr.rel (0) target = $region36
          $region35: #{upsample_block.1} parent=31 // pred_region
            // Predicated region
            $region37: #{upsample_block.1} parent=35 // pred_check
              _
            $region38: #{upsample_block.1} parent=35 // pred_check_branch
              %167 = sbr.rel (0) target = $region40
            $region39: #{upsample_block.1} parent=35 // pred_region
              loop: start=0, step=1, limit=1
              $region41: #{upsample_block.1} parent=39 // loop_pre_header
                _
              $region42: #{upsample_block.1} parent=39 // loop_header
                %s169 = sphi 0, %s173
                %p170 = scmp.ge.s32.totalorder %s169, 1
                %s174 = sphi %s163, %s163
                %s175 = sphi %s160, %s160
              $region43: #{upsample_block.1} parent=39 // loop_header_branch
                %172 = sbr.rel (%p170) target = $region47
              $region44: #{upsample_block.1} parent=39 // loop_body
                %v176 = vld [vmem:[%s174] sm:$0xff]
                %177 = vst [vmem:[%s175] sm:$0xff] %v176
                %v178 = vld [vmem:[%s174 + $0x8] sm:$0xff]
                %179 = vst [vmem:[%s175 + $0x8] sm:$0xff] %v178
                %v180 = vld [vmem:[%s174 + $0x20] sm:$0xff]
                %181 = vst [vmem:[%s175 + $0x10] sm:$0xff] %v180
                %v182 = vld [vmem:[%s174 + $0x28] sm:$0xff]
                %183 = vst [vmem:[%s175 + $0x18] sm:$0xff] %v182
                %v184 = vld [vmem:[%s174 + $0x40] sm:$0xff]
                %185 = vst [vmem:[%s175 + $0x20] sm:$0xff] %v184
                %v186 = vld [vmem:[%s174 + $0x48] sm:$0xff]
                %187 = vst [vmem:[%s175 + $0x28] sm:$0xff] %v186
                %v188 = vld [vmem:[%s174 + $0x60] sm:$0xff]
                %189 = vst [vmem:[%s175 + $0x30] sm:$0xff] %v188
                %v190 = vld [vmem:[%s174 + $0x68] sm:$0xff]
                %191 = vst [vmem:[%s175 + $0x38] sm:$0xff] %v190
                %v192 = vld [vmem:[%s174 + $0x80] sm:$0xff]
                %193 = vst [vmem:[%s175 + $0x40] sm:$0xff] %v192
                %v194 = vld [vmem:[%s174 + $0x88] sm:$0xff]
                %195 = vst [vmem:[%s175 + $0x48] sm:$0xff] %v194
              $region45: #{upsample_block.1} parent=39 // loop_footer
                %s173 = sadd.s32 1, %s169
              $region46: #{upsample_block.1} parent=39 // loop_footer_branch
                %168 = sbr.rel target = $region42
              $region47: #{upsample_block.1} parent=39 // loop_exit
                _
            $region40: #{upsample_block.1} parent=35 // pred_fallthru
              _
            // Predicated region
            $region48: #{upsample_block.1} parent=35 // pred_check
              _
            $region49: #{upsample_block.1} parent=35 // pred_check_branch
              %197 = sbr.rel target = $region51
            $region50: #{upsample_block.1} parent=35 // pred_region
              _
            $region51: #{upsample_block.1} parent=35 // pred_fallthru
              _
          $region36: #{upsample_block.1} parent=31 // pred_fallthru
            _
          %198 = vnop
        $region32: #{upsample_block.1} parent=27 // pred_fallthru
          _
      $region28: #{upsample_block.1} parent=5 // pred_fallthru
        _
      %p199 = scmp.le.s32.totalorder 1, %s11
      %p200 = scmp.lt.s32.totalorder %s11, 3
      %p201 = pnand %p199, %p200
      %p202 = pneg %p201
      // Predicated region
      $region52: #{upsample_block.1} parent=5 // pred_check
        _
      $region53: #{upsample_block.1} parent=5 // pred_check_branch
        %204 = sbr.rel (%p201) target = $region55
      $region54: #{upsample_block.1} parent=5 // pred_region
        %s205 = ssub.s32 %s11, 1
        %s206 = sand.u32 %s24, 1
        %s207 = sand.u32 %s24, 1
        %s208 = smul.addr %s207, 80
        %s209 = scalar_lea.vmem [#allocation3], %s208
        // Predicated region
        $region56: #{upsample_block.1} parent=54 // pred_check
          %p210 = pneg %p37
        $region57: #{upsample_block.1} parent=54 // pred_check_branch
          %212 = sbr.rel (%p210) target = $region59
        $region58: #{upsample_block.1} parent=54 // pred_region
          _
        $region59: #{upsample_block.1} parent=54 // pred_fallthru
          _
        %s213 = sand.u32 %s24, 1
        %s214 = sand.u32 %s24, 1
        %s215 = smul.addr %s214, 80
        %s216 = scalar_lea.vmem [#allocation3], %s215
        %p217 = pneg %p37
        %p218 = pneg %p34
        %p219 = pneg %p58
        %p220 = pneg %p55
        %p221 = pneg %p79
        %p222 = pneg %p76
        %p223 = pneg %p100
        %p224 = pneg %p97
        %p225 = pneg %p126
        %p226 = pneg %p123
        %s227 = sand.u32 %s113, 1
        %s228 = sand.u32 %s113, 1
        %s229 = smul.addr %s228, 32
        %s230 = scalar_lea.vmem [#allocation4], %s229
        %s231 = smul.u32 2, %s16
        %s232 = smul.u32 2, %s16
        %v233 = vld [vmem:[%s1] sm:$0xff]
        %v234 = vld [vmem:[%s1 + $0x8] sm:$0xff]
        %v235 = vld [vmem:[%s209] sm:$0xff]
        %v236 = vld [vmem:[%s209 + $0x8] sm:$0xff]
        %v237 = vld [vmem:[%s209 + $0x10] sm:$0xff]
        %v238 = vld [vmem:[%s209 + $0x18] sm:$0xff]
        %v239 = vld [vmem:[%s209 + $0x20] sm:$0xff]
        %v240 = vld [vmem:[%s209 + $0x28] sm:$0xff]
        %v241 = vld [vmem:[%s209 + $0x30] sm:$0xff]
        %v242 = vld [vmem:[%s209 + $0x38] sm:$0xff]
        %v243 = vld [vmem:[%s209 + $0x40] sm:$0xff]
        %v244 = vld [vmem:[%s209 + $0x48] sm:$0xff]
        %v245 = vld [vmem:[%s2] sm:$0xff]
        %v246 = vld [vmem:[%s2 + $0x8] sm:$0xff]
        %248 = vset.pattern.permute.xlu0 0
        %249 = vperm.xlu0 %248, %v245
        %v250 = vpop.permute.xlu0 %249
        %253 = vset.pattern.permute.xlu0 0
        %254 = vperm.xlu0 %253, %v246
        %v255 = vpop.permute.xlu0 %254
        %vm257 = vcmask 326656
        %v259 = vsel %vm257, %v233, 0
        %v262 = vsel %vm257, %v234, 0
        %264 = vmatpush.msra.mxu0 0.0
        %265 = vmatpush.msra.mxu0 0.0
        %266 = vmatpush.msra.mxu0 0.0
        %267 = vmatpush.msra.mxu0 0.0
        %268 = vmatpush.msra.mxu0 0.0
        %269 = vmatpush.msra.mxu0 0.0
        %270 = vmatpush.msra.mxu0 0.0
        %271 = vmatpush.msra.mxu0 0.0
        %272 = vmatpush.msra.mxu0 0.0
        %273 = vmatpush.msra.mxu0 0.0
        %274 = vmatpush.msra.mxu0 0.0
        %275 = vmatpush.msra.mxu0 %v243
        %276 = vmatpush.msra.mxu0 %v241
        %277 = vmatpush.msra.mxu0 %v239
        %278 = vmatpush.msra.mxu0 %v237
        %279 = vmatpush.msra.mxu0 %v235
        %280 = vmatmul.f32.gmra.mxu0 %v259
        %v281 = vpop.f32.mrf.mxu0
        %v282 = vadd.f32 %v250, %v281
        %283 = vmatmul.f32.gmra.mxu0 %v262
        %v284 = vpop.f32.mrf.mxu0
        %v285 = vadd.f32 %v255, %v284
        %286 = vdwg.mxu0
        %287 = vmatpush.msra.mxu0 0.0
        %288 = vmatpush.msra.mxu0 0.0
        %289 = vmatpush.msra.mxu0 0.0
        %290 = vmatpush.msra.mxu0 0.0
        %291 = vmatpush.msra.mxu0 0.0
        %292 = vmatpush.msra.mxu0 0.0
        %293 = vmatpush.msra.mxu0 0.0
        %294 = vmatpush.msra.mxu0 0.0
        %295 = vmatpush.msra.mxu0 0.0
        %296 = vmatpush.msra.mxu0 0.0
        %297 = vmatpush.msra.mxu0 0.0
        %298 = vmatpush.msra.mxu0 %v244
        %299 = vmatpush.msra.mxu0 %v242
        %300 = vmatpush.msra.mxu0 %v240
        %301 = vmatpush.msra.mxu0 %v238
        %302 = vmatpush.msra.mxu0 %v236
        %303 = vmatmul.f32.gmra.mxu0 %v259
        %v304 = vpop.f32.mrf.mxu0
        %v305 = vadd.f32 %v250, %v304
        %306 = vmatmul.f32.gmra.mxu0 %v262
        %v307 = vpop.f32.mrf.mxu0
        %v308 = vadd.f32 %v255, %v307
        %309 = vdwg.mxu0
        %s310 = sld [smem:[#allocation2]]
        %vm311 = vcmp.gt.f32.partialorder %v282, 0.0
        %vm312 = vcmp.gt.f32.partialorder %v305, 0.0
        %vm313 = vcmp.gt.f32.partialorder %v285, 0.0
        %vm314 = vcmp.gt.f32.partialorder %v308, 0.0
        %v315 = vstv %s310
        %v316 = vmul.f32 %v315, %v282
        %v317 = vmul.f32 %v315, %v305
        %v318 = vmul.f32 %v315, %v285
        %v319 = vmul.f32 %v315, %v308
        %v320 = vsel %vm311, %v282, %v316
        %v321 = vsel %vm312, %v305, %v317
        %v322 = vsel %vm313, %v285, %v318
        %v323 = vsel %vm314, %v308, %v319
        %324 = vst [vmem:[%s230] sm:$0xff] %v320
        %325 = vst [vmem:[%s230 + $0x8] sm:$0xff] %v321
        %326 = vst [vmem:[%s230 + $0x10] sm:$0xff] %v322
        %327 = vst [vmem:[%s230 + $0x18] sm:$0xff] %v323
        %s328 = sand.u32 %s113, 1
        %s329 = sand.u32 %s113, 1
        %s330 = smul.addr %s329, 32
        %s331 = scalar_lea.vmem [#allocation4], %s330
        // Predicated region
        $region60: #{upsample_block.1} parent=54 // pred_check
          %p332 = pneg %p123
        $region61: #{upsample_block.1} parent=54 // pred_check_branch
          %334 = sbr.rel (%p332) target = $region63
        $region62: #{upsample_block.1} parent=54 // pred_region
          %s335 = smul.u32 2, %s16
          %s336 = smul.addr %s335, 8
          %s337 = scalar_lea.vmem %s4, %s336
          // Predicated region
          $region64: #{upsample_block.1} parent=62 // pred_check
            _
          $region65: #{upsample_block.1} parent=62 // pred_check_branch
            %339 = sbr.rel (0) target = $region67
          $region66: #{upsample_block.1} parent=62 // pred_region
            // Predicated region
            $region68: #{upsample_block.1} parent=66 // pred_check
              _
            $region69: #{upsample_block.1} parent=66 // pred_check_branch
              %341 = sbr.rel (0) target = $region71
            $region70: #{upsample_block.1} parent=66 // pred_region
              loop: start=0, step=1, limit=1
              $region72: #{upsample_block.1} parent=70 // loop_pre_header
                _
              $region73: #{upsample_block.1} parent=70 // loop_header
                %s343 = sphi 0, %s347
                %p344 = scmp.ge.s32.totalorder %s343, 1
                %s348 = sphi %s331, %s331
                %s349 = sphi %s337, %s337
              $region74: #{upsample_block.1} parent=70 // loop_header_branch
                %346 = sbr.rel (%p344) target = $region78
              $region75: #{upsample_block.1} parent=70 // loop_body
                %v350 = vld [vmem:[%s348] sm:$0xff]
                %351 = vst [vmem:[%s349] sm:$0xff] %v350
                %v352 = vld [vmem:[%s348 + $0x8] sm:$0xff]
                %353 = vst [vmem:[%s349 + $0x8] sm:$0xff] %v352
                %v354 = vld [vmem:[%s348 + $0x10] sm:$0xff]
                %355 = vst [vmem:[%s349 + $0x20] sm:$0xff] %v354
                %v356 = vld [vmem:[%s348 + $0x18] sm:$0xff]
                %357 = vst [vmem:[%s349 + $0x28] sm:$0xff] %v356
              $region76: #{upsample_block.1} parent=70 // loop_footer
                %s347 = sadd.s32 1, %s343
              $region77: #{upsample_block.1} parent=70 // loop_footer_branch
                %342 = sbr.rel target = $region73
              $region78: #{upsample_block.1} parent=70 // loop_exit
                _
            $region71: #{upsample_block.1} parent=66 // pred_fallthru
              _
            // Predicated region
            $region79: #{upsample_block.1} parent=66 // pred_check
              _
            $region80: #{upsample_block.1} parent=66 // pred_check_branch
              %359 = sbr.rel target = $region82
            $region81: #{upsample_block.1} parent=66 // pred_region
              _
            $region82: #{upsample_block.1} parent=66 // pred_fallthru
              _
          $region67: #{upsample_block.1} parent=62 // pred_fallthru
            _
          %360 = vnop
        $region63: #{upsample_block.1} parent=54 // pred_fallthru
          _
      $region55: #{upsample_block.1} parent=5 // pred_fallthru
        _
      %p361 = scmp.le.s32.totalorder 2, %s11
      // Predicated region
      $region83: #{upsample_block.1} parent=5 // pred_check
        %p362 = pneg %p361
      $region84: #{upsample_block.1} parent=5 // pred_check_branch
        %364 = sbr.rel (%p362) target = $region86
      $region85: #{upsample_block.1} parent=5 // pred_region
        %s365 = ssub.s32 %s11, 2
        // Predicated region
        $region87: #{upsample_block.1} parent=85 // pred_check
          %p366 = pneg %p129
        $region88: #{upsample_block.1} parent=85 // pred_check_branch
          %368 = sbr.rel (%p366) target = $region90
        $region89: #{upsample_block.1} parent=85 // pred_region
          %s369 = sand.u32 %s114, 1
          %s370 = sand.u32 %s114, 1
          %s371 = smul.addr %s370, 32
          %s372 = scalar_lea.vmem [#allocation4], %s371
        $region90: #{upsample_block.1} parent=85 // pred_fallthru
          _
      $region86: #{upsample_block.1} parent=5 // pred_fallthru
        _
    $region6: #{upsample_block.1} parent=1 // loop_footer
      %s15 = sadd.s32 1, %s11
    $region7: #{upsample_block.1} parent=1 // loop_footer_branch
      %10 = sbr.rel target = $region3
    $region8: #{upsample_block.1} parent=1 // loop_exit
      _

</llo_original>
